<compile_context>
chip_gen: v7x
topology: tpu7x:2x2x1
jax: 0.10.0
libtpu: 0.0.40
codegen_flags: <defaults>
</compile_context>

<pallas_src>
import functools
import math

import jax
import jax.numpy as jnp
from jax.experimental import pallas as pl
from jax.experimental.pallas import tpu as pltpu


# ----------------------------- Pallas kernel ------------------------------- #

def _evaluator_kernel(n_corr, n_src, radius_sq, inv_ncorr, inv_nsrc,
                      gt_ref, realign_ref,
                      ref_c_ref, src_c_ref, src_p_ref,
                      ir_ref, rmse_ref):
    """Fused IR + RMSE kernel.

    gt_ref      : SMEM (4, 4)   GT transform (row-major)
    realign_ref : SMEM (4, 4)   realignment transform inv(GT) @ est
    ref_c_ref   : VMEM (24, Lc) packed ref corr points   (rows 0:8=x, 8:16=y, 16:24=z)
    src_c_ref   : VMEM (24, Lc) packed src corr points
    src_p_ref   : VMEM (24, Ls) packed src points
    ir_ref      : VMEM (1, 1)   inlier ratio
    rmse_ref    : VMEM (1, 1)   mean realignment displacement

    packed[c*8 + s, l] == points[l*8 + s, c]; padded entries are masked out
    against the static valid count.
    """

    def _valid_mask(shape, n_valid):
        lane = jax.lax.broadcasted_iota(jnp.int32, shape, 1)
        sub = jax.lax.broadcasted_iota(jnp.int32, shape, 0)
        return (lane * 8 + sub) < n_valid

    # ----- inlier ratio: mean(||ref - T_gt(src)|| < radius) over corr points -----
    sx = src_c_ref[0:8, :]
    sy = src_c_ref[8:16, :]
    sz = src_c_ref[16:24, :]
    d2 = jnp.zeros_like(sx)
    for i in range(3):
        ti = (gt_ref[i, 0] * sx + gt_ref[i, 1] * sy + gt_ref[i, 2] * sz
              + gt_ref[i, 3])
        diff = ref_c_ref[8 * i:8 * (i + 1), :] - ti
        d2 = d2 + diff * diff
    # dist < r  <=>  dist^2 < r^2 (both non-negative); padded slots forced to 0.
    inlier = jnp.where((d2 < radius_sq) & _valid_mask(d2.shape, n_corr),
                       jnp.float32(1.0), jnp.float32(0.0))
    ir = jnp.sum(inlier, axis=1, keepdims=True)     # (8, 1)
    ir = jnp.sum(ir, axis=0, keepdims=True)         # (1, 1)
    ir_ref[...] = ir * inv_ncorr

    # ----- RMSE: mean_i || T_realign(src_i) - src_i || over src points -----
    px = src_p_ref[0:8, :]
    py = src_p_ref[8:16, :]
    pz = src_p_ref[16:24, :]
    coords = (px, py, pz)
    d2p = jnp.zeros_like(px)
    for i in range(3):
        ti = (realign_ref[i, 0] * px + realign_ref[i, 1] * py
              + realign_ref[i, 2] * pz + realign_ref[i, 3])
        diff = ti - coords[i]
        d2p = d2p + diff * diff
    dist = jnp.where(_valid_mask(d2p.shape, n_src), jnp.sqrt(d2p),
                     jnp.float32(0.0))
    rm = jnp.sum(dist, axis=1, keepdims=True)
    rm = jnp.sum(rm, axis=0, keepdims=True)
    rmse_ref[...] = rm * inv_nsrc


# ----------------------------- kernel wrappers ------------------------------ #

def _round_up(x, m):
    return ((x + m - 1) // m) * m


def _pack_points(points, n_pad):
    """(N, >=3) -> (24, n_pad//8) sublane-dense slabs; zero-padded."""
    n = points.shape[0]
    buf = jnp.zeros((n_pad, 3), jnp.float32)
    buf = buf.at[:n, :].set(points[:, :3].astype(jnp.float32))
    buf = buf.reshape(n_pad // 8, 8, 3)      # (lane, sublane, coord)
    buf = jnp.transpose(buf, (2, 1, 0))      # (coord, sublane, lane)
    return buf.reshape(24, n_pad // 8)


def _fused_metrics(gt_transform, realign_transform,
                   ref_corr, src_corr, src_points, radius):
    n_corr = ref_corr.shape[0]
    n_src = src_points.shape[0]
    pad_c = max(_round_up(n_corr, 1024), 1024)   # 8 sublanes x 128 lanes
    pad_s = max(_round_up(n_src, 1024), 1024)

    ref_pk = _pack_points(ref_corr, pad_c)
    src_pk = _pack_points(src_corr, pad_c)
    srcp_pk = _pack_points(src_points, pad_s)

    kernel = functools.partial(
        _evaluator_kernel, n_corr, n_src, float(radius) ** 2,
        1.0 / float(max(n_corr, 1)), 1.0 / float(max(n_src, 1)))

    bytes_accessed = 4 * (2 * 24 * (pad_c // 8) + 24 * (pad_s // 8) + 2 * 16 + 2)
    cost = pl.CostEstimate(flops=30 * pad_c + 33 * pad_s,
                           transcendentals=pad_s,
                           bytes_accessed=bytes_accessed)

    ir, rmse = pl.pallas_call(
        kernel,
        out_shape=(jax.ShapeDtypeStruct((1, 1), jnp.float32),
                   jax.ShapeDtypeStruct((1, 1), jnp.float32)),
        in_specs=[pl.BlockSpec(memory_space=pltpu.MemorySpace.SMEM),
                  pl.BlockSpec(memory_space=pltpu.MemorySpace.SMEM),
                  pl.BlockSpec(memory_space=pltpu.MemorySpace.VMEM),
                  pl.BlockSpec(memory_space=pltpu.MemorySpace.VMEM),
                  pl.BlockSpec(memory_space=pltpu.MemorySpace.VMEM)],
        out_specs=(pl.BlockSpec(memory_space=pltpu.MemorySpace.VMEM),
                   pl.BlockSpec(memory_space=pltpu.MemorySpace.VMEM)),
        compiler_params=pltpu.CompilerParams(vmem_limit_bytes=64 * 1024 * 1024),
        cost_estimate=cost,
    )(gt_transform, realign_transform, ref_pk, src_pk, srcp_pk)
    return ir[0, 0], rmse[0, 0]


# ------------------------------ plain-JAX glue ------------------------------ #

def apply_transform(points_n3, transform):
    """points (N,3), transform (4,4): p @ R^T + t (matches GeoTransformer)."""
    rotation = transform[:3, :3]
    translation = transform[:3, 3]
    return points_n3 @ rotation.T + translation


def _isotropic_transform_error(gt_transform, est_transform):
    gt_rotation = gt_transform[:3, :3]
    gt_translation = gt_transform[:3, 3]
    est_rotation = est_transform[:3, :3]
    est_translation = est_transform[:3, 3]
    mat = est_rotation.T @ gt_rotation
    trace = mat[0, 0] + mat[1, 1] + mat[2, 2]
    x = jnp.clip(0.5 * (trace - 1.0), -1.0, 1.0)
    rre = 180.0 * jnp.arccos(x) / math.pi
    rte = jnp.linalg.norm(gt_translation - est_translation)
    return rre, rte


def _rigid_inverse(transform):
    """Closed-form inverse of a rigid transform: [[R^T, -R^T t], [0, 1]]."""
    r = transform[:3, :3]
    t = transform[:3, 3]
    rt = r.T
    inv = jnp.zeros((4, 4), jnp.float32)
    inv = inv.at[:3, :3].set(rt)
    inv = inv.at[:3, 3].set(-rt @ t)
    inv = inv.at[3, 3].set(1.0)
    return inv


@functools.partial(jax.jit,
                   static_argnames=('radius', 'rmse_thr', 'rre_thr', 'rte_thr'))
def _evaluator_forward(ref_corr_points, src_corr_points, src_points,
                       gt_transform_raw, est_transform,
                       *, radius, rmse_thr, rre_thr, rte_thr):
    gt = jnp.squeeze(gt_transform_raw).astype(jnp.float32)
    est = est_transform.astype(jnp.float32)

    # RRE / RTE / RR_T
    rre, rte = _isotropic_transform_error(gt, est)
    recall_t = jnp.logical_and(rre < rre_thr, rte < rte_thr).astype(jnp.float32)

    # realignment = inv(GT) @ est, using the closed-form rigid inverse
    realign = _rigid_inverse(gt) @ est

    # fused Pallas kernel: inlier ratio + realigned RMSE
    ir, rmse = _fused_metrics(gt, realign, ref_corr_points, src_corr_points,
                              src_points, radius)
    ir = jnp.where(jnp.isnan(ir), jnp.float32(0.0), ir)
    recall_rmse = (rmse < rmse_thr).astype(jnp.float32)

    return {'IR': ir, 'RRE': rre, 'RTE': rte, 'RR_T': recall_t,
            'RMSE': rmse, 'RR_RMSE': recall_rmse}


class Evaluator:
    """JAX/Pallas port of geot/utils/loss.py::Evaluator (forward path only)."""

    def __init__(self, cfg):
        self.acceptance_overlap = cfg['acceptance_overlap']  # only used by evaluate_coarse
        self.acceptance_radius = float(cfg['acceptance_radius'])
        self.acceptance_rmse = float(cfg['rmse_threshold'])
        self.acceptance_rre = float(cfg['rre_threshold'])
        self.acceptance_rte = float(cfg['rte_threshold'])

    # TODO(synk): evaluate_coarse (dense scatter of gt node correspondences +
    # gather) is not part of forward() and is left unimplemented.

    def evaluate_fine(self, output_dict, data_dict):
        return self(output_dict, data_dict)['IR']

    def evaluate_registration(self, output_dict, data_dict):
        r = self(output_dict, data_dict)
        return r['RRE'], r['RTE'], r['RR_T'], r['RMSE'], r['RR_RMSE']

    def __call__(self, output_dict, data_dict):
        return _evaluator_forward(
            output_dict['ref_corr_points'],
            output_dict['src_corr_points'],
            output_dict['src_points'],
            data_dict['transform'],
            output_dict['estimated_transform'],
            radius=self.acceptance_radius,
            rmse_thr=self.acceptance_rmse,
            rre_thr=self.acceptance_rre,
            rte_thr=self.acceptance_rte)


# ---------------------------------- main ----------------------------------- #

def _rot_z(theta):
    c, s = math.cos(theta), math.sin(theta)
    return jnp.array([[c, -s, 0.0], [s, c, 0.0], [0.0, 0.0, 1.0]],
                     dtype=jnp.float32)


def _make_transform(rotation, translation):
    t = jnp.eye(4, dtype=jnp.float32)
    t = t.at[:3, :3].set(rotation)
    t = t.at[:3, 3].set(translation)
    return t


if __name__ == "__main__":
    key = jax.random.PRNGKey(0)
    n_corr, n_src = 128, 256

    # Deterministic synthetic registration scenario.
    gt_transform = _make_transform(_rot_z(0.30),
                                   jnp.array([0.10, -0.20, 0.05], jnp.float32))
    est_transform = _make_transform(_rot_z(0.33),
                                    jnp.array([0.12, -0.18, 0.04], jnp.float32))

    k1, k2, k3 = jax.random.split(key, 3)
    src_corr_points = jax.random.uniform(k1, (n_corr, 3), jnp.float32,
                                         minval=-1.0, maxval=1.0)
    noise = 0.05 * jax.random.normal(k2, (n_corr, 3), jnp.float32)
    ref_corr_points = apply_transform(src_corr_points, gt_transform) + noise
    src_points = jax.random.uniform(k3, (n_src, 3), jnp.float32,
                                    minval=-1.0, maxval=1.0)

    output_dict = {
        'ref_corr_points': ref_corr_points,
        'src_corr_points': src_corr_points,
        'src_points': src_points,
        'estimated_transform': est_transform,
    }
    data_dict = {'transform': gt_transform[None]}  # (1, 4, 4), squeezed inside

    cfg = {
        'acceptance_overlap': 0.0,
        'acceptance_radius': 0.1,
        'rmse_threshold': 0.2,
        'rre_threshold': 15.0,
        'rte_threshold': 0.3,
    }

    evaluator = Evaluator(cfg)
    results = evaluator(output_dict, data_dict)
    results = jax.tree_util.tree_map(jax.block_until_ready, results)

    for k in ('IR', 'RRE', 'RTE', 'RR_T', 'RMSE', 'RR_RMSE'):
        _ = float(results[k])  # force materialization of every output
    print("KERNEL_OK")
</pallas_src>

<mosaic_0001>
module attributes {stable_mosaic.version = 11 : i64} {
  func.func @_evaluator_kernel(%arg0: memref<4x4xf32, #tpu.memory_space<smem>>, %arg1: memref<4x4xf32, #tpu.memory_space<smem>>, %arg2: memref<24x128xf32, #tpu.memory_space<vmem>>, %arg3: memref<24x128xf32, #tpu.memory_space<vmem>>, %arg4: memref<24x128xf32, #tpu.memory_space<vmem>>, %arg5: memref<1x1xf32, #tpu.memory_space<vmem>>, %arg6: memref<1x1xf32, #tpu.memory_space<vmem>>) attributes {dimension_semantics = [], scalar_prefetch = 0 : i64, scratch_operands = 0 : i64, tpu.core_type = #tpu.core_type<tc>} {
    %c0 = arith.constant 0 : index
    %c0_0 = arith.constant 0 : index
    %0 = vector.load %arg3[%c0, %c0_0] : memref<24x128xf32, #tpu.memory_space<vmem>>, vector<8x128xf32>
    %c8 = arith.constant 8 : index
    %c0_1 = arith.constant 0 : index
    %1 = vector.load %arg3[%c8, %c0_1] : memref<24x128xf32, #tpu.memory_space<vmem>>, vector<8x128xf32>
    %c16 = arith.constant 16 : index
    %c0_2 = arith.constant 0 : index
    %2 = vector.load %arg3[%c16, %c0_2] : memref<24x128xf32, #tpu.memory_space<vmem>>, vector<8x128xf32>
    %cst = arith.constant 0.000000e+00 : f32
    %3 = vector.broadcast %cst : f32 to vector<8x128xf32>
    %c0_3 = arith.constant 0 : index
    %c0_4 = arith.constant 0 : index
    %4 = memref.load %arg0[%c0_3, %c0_4] : memref<4x4xf32, #tpu.memory_space<smem>>
    %5 = vector.broadcast %4 : f32 to vector<8x128xf32>
    %6 = arith.mulf %5, %0 : vector<8x128xf32>
    %c0_5 = arith.constant 0 : index
    %c1 = arith.constant 1 : index
    %7 = memref.load %arg0[%c0_5, %c1] : memref<4x4xf32, #tpu.memory_space<smem>>
    %8 = vector.broadcast %7 : f32 to vector<8x128xf32>
    %9 = arith.mulf %8, %1 : vector<8x128xf32>
    %10 = arith.addf %6, %9 : vector<8x128xf32>
    %c0_6 = arith.constant 0 : index
    %c2 = arith.constant 2 : index
    %11 = memref.load %arg0[%c0_6, %c2] : memref<4x4xf32, #tpu.memory_space<smem>>
    %12 = vector.broadcast %11 : f32 to vector<8x128xf32>
    %13 = arith.mulf %12, %2 : vector<8x128xf32>
    %14 = arith.addf %10, %13 : vector<8x128xf32>
    %c0_7 = arith.constant 0 : index
    %c3 = arith.constant 3 : index
    %15 = memref.load %arg0[%c0_7, %c3] : memref<4x4xf32, #tpu.memory_space<smem>>
    %16 = vector.broadcast %15 : f32 to vector<8x128xf32>
    %17 = arith.addf %14, %16 : vector<8x128xf32>
    %c0_8 = arith.constant 0 : index
    %c0_9 = arith.constant 0 : index
    %18 = vector.load %arg2[%c0_8, %c0_9] : memref<24x128xf32, #tpu.memory_space<vmem>>, vector<8x128xf32>
    %19 = arith.subf %18, %17 : vector<8x128xf32>
    %20 = arith.mulf %19, %19 : vector<8x128xf32>
    %21 = arith.addf %3, %20 : vector<8x128xf32>
    %c1_10 = arith.constant 1 : index
    %c0_11 = arith.constant 0 : index
    %22 = memref.load %arg0[%c1_10, %c0_11] : memref<4x4xf32, #tpu.memory_space<smem>>
    %23 = vector.broadcast %22 : f32 to vector<8x128xf32>
    %24 = arith.mulf %23, %0 : vector<8x128xf32>
    %c1_12 = arith.constant 1 : index
    %c1_13 = arith.constant 1 : index
    %25 = memref.load %arg0[%c1_12, %c1_13] : memref<4x4xf32, #tpu.memory_space<smem>>
    %26 = vector.broadcast %25 : f32 to vector<8x128xf32>
    %27 = arith.mulf %26, %1 : vector<8x128xf32>
    %28 = arith.addf %24, %27 : vector<8x128xf32>
    %c1_14 = arith.constant 1 : index
    %c2_15 = arith.constant 2 : index
    %29 = memref.load %arg0[%c1_14, %c2_15] : memref<4x4xf32, #tpu.memory_space<smem>>
    %30 = vector.broadcast %29 : f32 to vector<8x128xf32>
    %31 = arith.mulf %30, %2 : vector<8x128xf32>
    %32 = arith.addf %28, %31 : vector<8x128xf32>
    %c1_16 = arith.constant 1 : index
    %c3_17 = arith.constant 3 : index
    %33 = memref.load %arg0[%c1_16, %c3_17] : memref<4x4xf32, #tpu.memory_space<smem>>
    %34 = vector.broadcast %33 : f32 to vector<8x128xf32>
    %35 = arith.addf %32, %34 : vector<8x128xf32>
    %c8_18 = arith.constant 8 : index
    %c0_19 = arith.constant 0 : index
    %36 = vector.load %arg2[%c8_18, %c0_19] : memref<24x128xf32, #tpu.memory_space<vmem>>, vector<8x128xf32>
    %37 = arith.subf %36, %35 : vector<8x128xf32>
    %38 = arith.mulf %37, %37 : vector<8x128xf32>
    %39 = arith.addf %21, %38 : vector<8x128xf32>
    %c2_20 = arith.constant 2 : index
    %c0_21 = arith.constant 0 : index
    %40 = memref.load %arg0[%c2_20, %c0_21] : memref<4x4xf32, #tpu.memory_space<smem>>
    %41 = vector.broadcast %40 : f32 to vector<8x128xf32>
    %42 = arith.mulf %41, %0 : vector<8x128xf32>
    %c2_22 = arith.constant 2 : index
    %c1_23 = arith.constant 1 : index
    %43 = memref.load %arg0[%c2_22, %c1_23] : memref<4x4xf32, #tpu.memory_space<smem>>
    %44 = vector.broadcast %43 : f32 to vector<8x128xf32>
    %45 = arith.mulf %44, %1 : vector<8x128xf32>
    %46 = arith.addf %42, %45 : vector<8x128xf32>
    %c2_24 = arith.constant 2 : index
    %c2_25 = arith.constant 2 : index
    %47 = memref.load %arg0[%c2_24, %c2_25] : memref<4x4xf32, #tpu.memory_space<smem>>
    %48 = vector.broadcast %47 : f32 to vector<8x128xf32>
    %49 = arith.mulf %48, %2 : vector<8x128xf32>
    %50 = arith.addf %46, %49 : vector<8x128xf32>
    %c2_26 = arith.constant 2 : index
    %c3_27 = arith.constant 3 : index
    %51 = memref.load %arg0[%c2_26, %c3_27] : memref<4x4xf32, #tpu.memory_space<smem>>
    %52 = vector.broadcast %51 : f32 to vector<8x128xf32>
    %53 = arith.addf %50, %52 : vector<8x128xf32>
    %c16_28 = arith.constant 16 : index
    %c0_29 = arith.constant 0 : index
    %54 = vector.load %arg2[%c16_28, %c0_29] : memref<24x128xf32, #tpu.memory_space<vmem>>, vector<8x128xf32>
    %55 = arith.subf %54, %53 : vector<8x128xf32>
    %56 = arith.mulf %55, %55 : vector<8x128xf32>
    %57 = arith.addf %39, %56 : vector<8x128xf32>
    %cst_30 = arith.constant 0.00999999977 : f32
    %58 = vector.broadcast %cst_30 : f32 to vector<8x128xf32>
    %59 = arith.cmpf olt, %57, %58 : vector<8x128xf32>
    %60 = tpu.iota {dimensions = array<i32: 1>} : vector<8x128xi32>
    %61 = tpu.iota {dimensions = array<i32: 0>} : vector<8x128xi32>
    %c8_i32 = arith.constant 8 : i32
    %62 = vector.broadcast %c8_i32 : i32 to vector<8x128xi32>
    %63 = arith.muli %60, %62 : vector<8x128xi32>
    %64 = arith.addi %63, %61 : vector<8x128xi32>
    %c128_i32 = arith.constant 128 : i32
    %65 = vector.broadcast %c128_i32 : i32 to vector<8x128xi32>
    %66 = arith.cmpi slt, %64, %65 : vector<8x128xi32>
    %67 = arith.andi %59, %66 : vector<8x128xi1>
    %cst_31 = arith.constant 1.000000e+00 : f32
    %cst_32 = arith.constant 0.000000e+00 : f32
    %68 = vector.broadcast %cst_31 : f32 to vector<8x128xf32>
    %69 = vector.broadcast %cst_32 : f32 to vector<8x128xf32>
    %70 = arith.select %67, %68, %69 : vector<8x128xi1>, vector<8x128xf32>
    %cst_33 = arith.constant dense<0.000000e+00> : vector<8xf32>
    %71 = vector.multi_reduction <add>, %70, %cst_33 [1] : vector<8x128xf32> to vector<8xf32>
    %72 = vector.shape_cast %71 : vector<8xf32> to vector<8x1xf32>
    %cst_34 = arith.constant dense<0.000000e+00> : vector<1xf32>
    %73 = vector.multi_reduction <add>, %72, %cst_34 [0] : vector<8x1xf32> to vector<1xf32>
    %74 = vector.shape_cast %73 : vector<1xf32> to vector<1x1xf32>
    %cst_35 = arith.constant 7.812500e-03 : f32
    %75 = vector.broadcast %cst_35 : f32 to vector<1x1xf32>
    %76 = arith.mulf %74, %75 : vector<1x1xf32>
    %c0_36 = arith.constant 0 : index
    %c0_37 = arith.constant 0 : index
    %77 = vector.load %arg5[%c0_36, %c0_37] : memref<1x1xf32, #tpu.memory_space<vmem>>, vector<1x1xf32>
    tpu.vector_store %arg5[%c0_36, %c0_37], %76 {strides = array<i32>} : memref<1x1xf32, #tpu.memory_space<vmem>>, vector<1x1xf32>,
    %c0_38 = arith.constant 0 : index
    %c0_39 = arith.constant 0 : index
    %78 = vector.load %arg4[%c0_38, %c0_39] : memref<24x128xf32, #tpu.memory_space<vmem>>, vector<8x128xf32>
    %c8_40 = arith.constant 8 : index
    %c0_41 = arith.constant 0 : index
    %79 = vector.load %arg4[%c8_40, %c0_41] : memref<24x128xf32, #tpu.memory_space<vmem>>, vector<8x128xf32>
    %c16_42 = arith.constant 16 : index
    %c0_43 = arith.constant 0 : index
    %80 = vector.load %arg4[%c16_42, %c0_43] : memref<24x128xf32, #tpu.memory_space<vmem>>, vector<8x128xf32>
    %cst_44 = arith.constant 0.000000e+00 : f32
    %81 = vector.broadcast %cst_44 : f32 to vector<8x128xf32>
    %c0_45 = arith.constant 0 : index
    %c0_46 = arith.constant 0 : index
    %82 = memref.load %arg1[%c0_45, %c0_46] : memref<4x4xf32, #tpu.memory_space<smem>>
    %83 = vector.broadcast %82 : f32 to vector<8x128xf32>
    %84 = arith.mulf %83, %78 : vector<8x128xf32>
    %c0_47 = arith.constant 0 : index
    %c1_48 = arith.constant 1 : index
    %85 = memref.load %arg1[%c0_47, %c1_48] : memref<4x4xf32, #tpu.memory_space<smem>>
    %86 = vector.broadcast %85 : f32 to vector<8x128xf32>
    %87 = arith.mulf %86, %79 : vector<8x128xf32>
    %88 = arith.addf %84, %87 : vector<8x128xf32>
    %c0_49 = arith.constant 0 : index
    %c2_50 = arith.constant 2 : index
    %89 = memref.load %arg1[%c0_49, %c2_50] : memref<4x4xf32, #tpu.memory_space<smem>>
    %90 = vector.broadcast %89 : f32 to vector<8x128xf32>
    %91 = arith.mulf %90, %80 : vector<8x128xf32>
    %92 = arith.addf %88, %91 : vector<8x128xf32>
    %c0_51 = arith.constant 0 : index
    %c3_52 = arith.constant 3 : index
    %93 = memref.load %arg1[%c0_51, %c3_52] : memref<4x4xf32, #tpu.memory_space<smem>>
    %94 = vector.broadcast %93 : f32 to vector<8x128xf32>
    %95 = arith.addf %92, %94 : vector<8x128xf32>
    %96 = arith.subf %95, %78 : vector<8x128xf32>
    %97 = arith.mulf %96, %96 : vector<8x128xf32>
    %98 = arith.addf %81, %97 : vector<8x128xf32>
    %c1_53 = arith.constant 1 : index
    %c0_54 = arith.constant 0 : index
    %99 = memref.load %arg1[%c1_53, %c0_54] : memref<4x4xf32, #tpu.memory_space<smem>>
    %100 = vector.broadcast %99 : f32 to vector<8x128xf32>
    %101 = arith.mulf %100, %78 : vector<8x128xf32>
    %c1_55 = arith.constant 1 : index
    %c1_56 = arith.constant 1 : index
    %102 = memref.load %arg1[%c1_55, %c1_56] : memref<4x4xf32, #tpu.memory_space<smem>>
    %103 = vector.broadcast %102 : f32 to vector<8x128xf32>
    %104 = arith.mulf %103, %79 : vector<8x128xf32>
    %105 = arith.addf %101, %104 : vector<8x128xf32>
    %c1_57 = arith.constant 1 : index
    %c2_58 = arith.constant 2 : index
    %106 = memref.load %arg1[%c1_57, %c2_58] : memref<4x4xf32, #tpu.memory_space<smem>>
    %107 = vector.broadcast %106 : f32 to vector<8x128xf32>
    %108 = arith.mulf %107, %80 : vector<8x128xf32>
    %109 = arith.addf %105, %108 : vector<8x128xf32>
    %c1_59 = arith.constant 1 : index
    %c3_60 = arith.constant 3 : index
    %110 = memref.load %arg1[%c1_59, %c3_60] : memref<4x4xf32, #tpu.memory_space<smem>>
    %111 = vector.broadcast %110 : f32 to vector<8x128xf32>
    %112 = arith.addf %109, %111 : vector<8x128xf32>
    %113 = arith.subf %112, %79 : vector<8x128xf32>
    %114 = arith.mulf %113, %113 : vector<8x128xf32>
    %115 = arith.addf %98, %114 : vector<8x128xf32>
    %c2_61 = arith.constant 2 : index
    %c0_62 = arith.constant 0 : index
    %116 = memref.load %arg1[%c2_61, %c0_62] : memref<4x4xf32, #tpu.memory_space<smem>>
    %117 = vector.broadcast %116 : f32 to vector<8x128xf32>
    %118 = arith.mulf %117, %78 : vector<8x128xf32>
    %c2_63 = arith.constant 2 : index
    %c1_64 = arith.constant 1 : index
    %119 = memref.load %arg1[%c2_63, %c1_64] : memref<4x4xf32, #tpu.memory_space<smem>>
    %120 = vector.broadcast %119 : f32 to vector<8x128xf32>
    %121 = arith.mulf %120, %79 : vector<8x128xf32>
    %122 = arith.addf %118, %121 : vector<8x128xf32>
    %c2_65 = arith.constant 2 : index
    %c2_66 = arith.constant 2 : index
    %123 = memref.load %arg1[%c2_65, %c2_66] : memref<4x4xf32, #tpu.memory_space<smem>>
    %124 = vector.broadcast %123 : f32 to vector<8x128xf32>
    %125 = arith.mulf %124, %80 : vector<8x128xf32>
    %126 = arith.addf %122, %125 : vector<8x128xf32>
    %c2_67 = arith.constant 2 : index
    %c3_68 = arith.constant 3 : index
    %127 = memref.load %arg1[%c2_67, %c3_68] : memref<4x4xf32, #tpu.memory_space<smem>>
    %128 = vector.broadcast %127 : f32 to vector<8x128xf32>
    %129 = arith.addf %126, %128 : vector<8x128xf32>
    %130 = arith.subf %129, %80 : vector<8x128xf32>
    %131 = arith.mulf %130, %130 : vector<8x128xf32>
    %132 = arith.addf %115, %131 : vector<8x128xf32>
    %133 = tpu.iota {dimensions = array<i32: 1>} : vector<8x128xi32>
    %134 = tpu.iota {dimensions = array<i32: 0>} : vector<8x128xi32>
    %c8_i32_69 = arith.constant 8 : i32
    %135 = vector.broadcast %c8_i32_69 : i32 to vector<8x128xi32>
    %136 = arith.muli %133, %135 : vector<8x128xi32>
    %137 = arith.addi %136, %134 : vector<8x128xi32>
    %c256_i32 = arith.constant 256 : i32
    %138 = vector.broadcast %c256_i32 : i32 to vector<8x128xi32>
    %139 = arith.cmpi slt, %137, %138 : vector<8x128xi32>
    %140 = math.sqrt %132 : vector<8x128xf32>
    %cst_70 = arith.constant 0.000000e+00 : f32
    %141 = vector.broadcast %cst_70 : f32 to vector<8x128xf32>
    %142 = arith.select %139, %140, %141 : vector<8x128xi1>, vector<8x128xf32>
    %cst_71 = arith.constant dense<0.000000e+00> : vector<8xf32>
    %143 = vector.multi_reduction <add>, %142, %cst_71 [1] : vector<8x128xf32> to vector<8xf32>
    %144 = vector.shape_cast %143 : vector<8xf32> to vector<8x1xf32>
    %cst_72 = arith.constant dense<0.000000e+00> : vector<1xf32>
    %145 = vector.multi_reduction <add>, %144, %cst_72 [0] : vector<8x1xf32> to vector<1xf32>
    %146 = vector.shape_cast %145 : vector<1xf32> to vector<1x1xf32>
    %cst_73 = arith.constant 3.906250e-03 : f32
    %147 = vector.broadcast %cst_73 : f32 to vector<1x1xf32>
    %148 = arith.mulf %146, %147 : vector<1x1xf32>
    %c0_74 = arith.constant 0 : index
    %c0_75 = arith.constant 0 : index
    %149 = vector.load %arg6[%c0_74, %c0_75] : memref<1x1xf32, #tpu.memory_space<vmem>>, vector<1x1xf32>
    tpu.vector_store %arg6[%c0_74, %c0_75], %148 {strides = array<i32>} : memref<1x1xf32, #tpu.memory_space<vmem>>, vector<1x1xf32>,
    return
  }
}

</mosaic_0001>

<llo_original>
// kernel: _evaluator_forward.1
$region0: #{_evaluator_forward.1}
  #allocation0 [shape = 'u32[]', space=smem, size = 0x4, offset = 0x4, fixed_abs, tag = 'smem constant byte address 0x4 - core index']
  #allocation1 [shape = 'u32[144,128]{1,0:T(1,128)}', space=vmem, size = 0x12000, scoped, tag = 'internal scratch']
  %s0 = inlined_call_operand.hbm [shape: f32[4,4], index: 0, kind: input, shape index: {}]
  %s1 = inlined_call_operand.hbm [shape: f32[4,4], index: 1, kind: input, shape index: {}]
  %s2 = inlined_call_operand.hbm [shape: f32[24,128], index: 2, kind: input, shape index: {}]
  %s3 = inlined_call_operand.hbm [shape: f32[24,128], index: 3, kind: input, shape index: {}]
  %s4 = inlined_call_operand.hbm [shape: f32[24,128], index: 4, kind: input, shape index: {}]
  %s5 = inlined_call_operand.hbm [shape: f32[1,1], index: 5, kind: output, shape index: {0}]
  %s6 = inlined_call_operand.hbm [shape: f32[1,1], index: 6, kind: output, shape index: {1}]
  %7 = xla_tuple %s5, %s6
  %s8 = sld [smem:[#allocation0]]
  $region58: #{_evaluator_forward.1} parent=0
    _
  %s10 = ssub.s32 1, %s8
  %s11 = scalar_select 0, %s10, %s8
  $region1: #{_evaluator_forward.1} parent=0
    #allocation2 [shape = 'u8[2048]{0}', space=smem, size = 0x800, scoped, tag = 'input window, operand 0, single buffered']
    #allocation3 [shape = 's32[1]{0}', space=sflag, size = 0x4, scoped, tag = 'scoped memory for _evaluator_forward.1']
    #allocation4 [shape = 's32[1]{0}', space=sflag, size = 0x4, scoped, tag = 'scoped memory for _evaluator_forward.1']
    #allocation5 [shape = 's32[1]{0}', space=sflag, size = 0x4, scoped, tag = 'scoped memory for _evaluator_forward.1']
    #allocation6 [shape = 'u8[2048]{0}', space=smem, size = 0x800, scoped, tag = 'input window, operand 1, single buffered']
    #allocation7 [shape = 's32[1]{0}', space=sflag, size = 0x4, scoped, tag = 'scoped memory for _evaluator_forward.1']
    #allocation8 [shape = 'u8[12288]{0}', space=vmem, size = 0x3000, scoped, tag = 'input window, operand 2, single buffered']
    #allocation9 [shape = 'u8[12288]{0}', space=vmem, size = 0x3000, scoped, tag = 'input window, operand 3, single buffered']
    #allocation10 [shape = 's32[1]{0}', space=sflag, size = 0x4, scoped, tag = 'scoped memory for _evaluator_forward.1']
    #allocation11 [shape = 'u8[12288]{0}', space=vmem, size = 0x3000, scoped, tag = 'input window, operand 4, single buffered']
    #allocation12 [shape = 'u8[512]{0}', space=vmem, size = 0x400, scoped, tag = 'output window, operand 0, single buffered']
    #allocation13 [shape = 'u8[512]{0}', space=vmem, size = 0x400, scoped, tag = 'output window, operand 1, single buffered']
    #allocation14 [shape = 's32[1]{0}', space=sflag, size = 0x4, scoped, tag = 'scoped memory for _evaluator_forward.1']
    %12 = vsyncpa [#allocation5], 0
    %13 = vsyncpa [#allocation7], 0
    %14 = vsyncpa [#allocation3], 0
    %15 = vsyncpa [#allocation10], 0
    %16 = vsyncpa [#allocation4], 0
    %17 = vsyncpa [#allocation14], 0
    // Predicated region
    $region2: #{_evaluator_forward.1} parent=1 // pred_check
      _
    $region3: #{_evaluator_forward.1} parent=1 // pred_check_branch
      %19 = sbr.rel (0) target = $region5
    $region4: #{_evaluator_forward.1} parent=1 // pred_region
      %s21 = ssub.s32 64, 64
      %22 = vsyncadd [#allocation5], %s21
      %25 = dma.hbm_to_smem %s0, 64, [#allocation2], [#allocation5]
    $region5: #{_evaluator_forward.1} parent=1 // pred_fallthru
      _
    // Predicated region
    $region6: #{_evaluator_forward.1} parent=1 // pred_check
      _
    $region7: #{_evaluator_forward.1} parent=1 // pred_check_branch
      %27 = sbr.rel (0) target = $region9
    $region8: #{_evaluator_forward.1} parent=1 // pred_region
      %s29 = ssub.s32 64, 64
      %30 = vsyncadd [#allocation7], %s29
      %33 = dma.hbm_to_smem %s1, 64, [#allocation6], [#allocation7]
    $region9: #{_evaluator_forward.1} parent=1 // pred_fallthru
      _
    // Predicated region
    $region10: #{_evaluator_forward.1} parent=1 // pred_check
      _
    $region11: #{_evaluator_forward.1} parent=1 // pred_check_branch
      %35 = sbr.rel (0) target = $region13
    $region12: #{_evaluator_forward.1} parent=1 // pred_region
      %s37 = ssub.s32 384, 384
      %38 = vsyncadd [#allocation3], %s37
      %s39 = sshll.u32 [#allocation8], 4
      %s40 = int_to_ptr.vmem [resolvable:$true] %s39
      %45 = dma.hbm_to_vmem [thread:$0]  %s2, 384, %s40, [#allocation3], 128, 128, 8
    $region13: #{_evaluator_forward.1} parent=1 // pred_fallthru
      _
    // Predicated region
    $region14: #{_evaluator_forward.1} parent=1 // pred_check
      _
    $region15: #{_evaluator_forward.1} parent=1 // pred_check_branch
      %47 = sbr.rel (0) target = $region17
    $region16: #{_evaluator_forward.1} parent=1 // pred_region
      %s49 = ssub.s32 384, 384
      %50 = vsyncadd [#allocation10], %s49
      %s51 = sshll.u32 [#allocation9], 4
      %s52 = int_to_ptr.vmem [resolvable:$true] %s51
      %57 = dma.hbm_to_vmem [thread:$0]  %s3, 384, %s52, [#allocation10], 128, 128, 8
    $region17: #{_evaluator_forward.1} parent=1 // pred_fallthru
      _
    // Predicated region
    $region18: #{_evaluator_forward.1} parent=1 // pred_check
      _
    $region19: #{_evaluator_forward.1} parent=1 // pred_check_branch
      %59 = sbr.rel (0) target = $region21
    $region20: #{_evaluator_forward.1} parent=1 // pred_region
      %s61 = ssub.s32 384, 384
      %62 = vsyncadd [#allocation10], %s61
      %s63 = sshll.u32 [#allocation11], 4
      %s64 = int_to_ptr.vmem [resolvable:$true] %s63
      %69 = dma.hbm_to_vmem [thread:$0]  %s4, 384, %s64, [#allocation10], 128, 128, 8
    $region21: #{_evaluator_forward.1} parent=1 // pred_fallthru
      _
    // Predicated region
    $region22: #{_evaluator_forward.1} parent=1 // pred_check
      _
    $region23: #{_evaluator_forward.1} parent=1 // pred_check_branch
      %71 = sbr.rel (0) target = $region25
    $region24: #{_evaluator_forward.1} parent=1 // pred_region
      %72 = dma.done [#allocation5], 64
    $region25: #{_evaluator_forward.1} parent=1 // pred_fallthru
      _
    // Predicated region
    $region26: #{_evaluator_forward.1} parent=1 // pred_check
      _
    $region27: #{_evaluator_forward.1} parent=1 // pred_check_branch
      %74 = sbr.rel (0) target = $region29
    $region28: #{_evaluator_forward.1} parent=1 // pred_region
      %75 = dma.done [#allocation7], 64
    $region29: #{_evaluator_forward.1} parent=1 // pred_fallthru
      _
    // Predicated region
    $region30: #{_evaluator_forward.1} parent=1 // pred_check
      _
    $region31: #{_evaluator_forward.1} parent=1 // pred_check_branch
      %77 = sbr.rel (0) target = $region33
    $region32: #{_evaluator_forward.1} parent=1 // pred_region
      %78 = dma.done [#allocation3], 384
    $region33: #{_evaluator_forward.1} parent=1 // pred_fallthru
      _
    // Predicated region
    $region34: #{_evaluator_forward.1} parent=1 // pred_check
      _
    $region35: #{_evaluator_forward.1} parent=1 // pred_check_branch
      %80 = sbr.rel (0) target = $region37
    $region36: #{_evaluator_forward.1} parent=1 // pred_region
      %81 = dma.done [#allocation10], 384
    $region37: #{_evaluator_forward.1} parent=1 // pred_fallthru
      _
    // Predicated region
    $region38: #{_evaluator_forward.1} parent=1 // pred_check
      _
    $region39: #{_evaluator_forward.1} parent=1 // pred_check_branch
      %83 = sbr.rel (0) target = $region41
    $region40: #{_evaluator_forward.1} parent=1 // pred_region
      %84 = dma.done [#allocation10], 384
    $region41: #{_evaluator_forward.1} parent=1 // pred_fallthru
      _
    %85 = sfence
    %v86 = vld [vmem:[#allocation9] sm:$0xff]
    %v87 = vld [vmem:[#allocation9 + $0x8] sm:$0xff]
    %v88 = vld [vmem:[#allocation9 + $0x10] sm:$0xff]
    %s89 = sld [smem:[#allocation2]]
    %v90 = vstv %s89
    %v91 = vmul.f32 %v90, %v86
    %s92 = sld [smem:[#allocation2 + $0x1]]
    %v93 = vstv %s92
    %v94 = vmul.f32 %v93, %v87
    %v95 = vadd.f32 %v91, %v94
    %s96 = sld [smem:[#allocation2 + $0x2]]
    %v97 = vstv %s96
    %v98 = vmul.f32 %v97, %v88
    %v99 = vadd.f32 %v95, %v98
    %s100 = sld [smem:[#allocation2 + $0x3]]
    %v101 = vstv %s100
    %v102 = vadd.f32 %v99, %v101
    %v103 = vld [vmem:[#allocation8] sm:$0xff]
    %v104 = vsub.f32 %v103, %v102
    %v105 = vmul.f32 %v104, %v104
    %v106 = vadd.f32 %v105, 0.0
    %s107 = sld [smem:[#allocation2 + $0x80]]
    %v108 = vstv %s107
    %v109 = vmul.f32 %v108, %v86
    %s110 = sld [smem:[#allocation2 + $0x81]]
    %v111 = vstv %s110
    %v112 = vmul.f32 %v111, %v87
    %v113 = vadd.f32 %v109, %v112
    %s114 = sld [smem:[#allocation2 + $0x82]]
    %v115 = vstv %s114
    %v116 = vmul.f32 %v115, %v88
    %v117 = vadd.f32 %v113, %v116
    %s118 = sld [smem:[#allocation2 + $0x83]]
    %v119 = vstv %s118
    %v120 = vadd.f32 %v117, %v119
    %v121 = vld [vmem:[#allocation8 + $0x8] sm:$0xff]
    %v122 = vsub.f32 %v121, %v120
    %v123 = vmul.f32 %v122, %v122
    %v124 = vadd.f32 %v106, %v123
    %s125 = sld [smem:[#allocation2 + $0x100]]
    %v126 = vstv %s125
    %v127 = vmul.f32 %v126, %v86
    %s128 = sld [smem:[#allocation2 + $0x101]]
    %v129 = vstv %s128
    %v130 = vmul.f32 %v129, %v87
    %v131 = vadd.f32 %v127, %v130
    %s132 = sld [smem:[#allocation2 + $0x102]]
    %v133 = vstv %s132
    %v134 = vmul.f32 %v133, %v88
    %v135 = vadd.f32 %v131, %v134
    %s136 = sld [smem:[#allocation2 + $0x103]]
    %v137 = vstv %s136
    %v138 = vadd.f32 %v135, %v137
    %v139 = vld [vmem:[#allocation8 + $0x10] sm:$0xff]
    %v140 = vsub.f32 %v139, %v138
    %v141 = vmul.f32 %v140, %v140
    %v142 = vadd.f32 %v124, %v141
    %vm143 = vcmp.lt.f32.partialorder %v142, 0.01
    %v144 = vlaneseq
    %v145 = vand.u32 %v144, 127
    %v146 = vlaneseq
    %v147 = vshrl.u32 %v146, 7
    %v148 = vmul.u32 %v145, 8
    %v149 = vadd.s32 %v148, %v147
    %vm150 = vcmp.lt.s32.totalorder %v149, 128
    %vm151 = vmand %vm143, %vm150
    %v152 = vsel %vm151, 1.0, 0.0
    %153 = vadd.xlane.f32.xlu0 %v152
    %v154 = vpop.xlane.xlu0 %153
    %v155 = vrot.slane %v154, 4
    %v156 = vadd.f32 %v154, %v155
    %v157 = vrot.slane %v156, 2
    %v158 = vadd.f32 %v156, %v157
    %v159 = vrot.slane %v158, 1
    %v160 = vadd.f32 %v158, %v159
    %v161 = vmul.f32 %v160, 0.0078125
    %vm162 = vcmask 0
    %163 = vst.msk [vmem:[#allocation12] sm:$0x1] %vm162, %v161
    %v164 = vld [vmem:[#allocation11] sm:$0xff]
    %v165 = vld [vmem:[#allocation11 + $0x8] sm:$0xff]
    %v166 = vld [vmem:[#allocation11 + $0x10] sm:$0xff]
    %s167 = sld [smem:[#allocation6]]
    %v168 = vstv %s167
    %v169 = vmul.f32 %v168, %v164
    %s170 = sld [smem:[#allocation6 + $0x1]]
    %v171 = vstv %s170
    %v172 = vmul.f32 %v171, %v165
    %v173 = vadd.f32 %v169, %v172
    %s174 = sld [smem:[#allocation6 + $0x2]]
    %v175 = vstv %s174
    %v176 = vmul.f32 %v175, %v166
    %v177 = vadd.f32 %v173, %v176
    %s178 = sld [smem:[#allocation6 + $0x3]]
    %v179 = vstv %s178
    %v180 = vadd.f32 %v177, %v179
    %v181 = vsub.f32 %v180, %v164
    %v182 = vmul.f32 %v181, %v181
    %v183 = vadd.f32 %v182, 0.0
    %s184 = sld [smem:[#allocation6 + $0x80]]
    %v185 = vstv %s184
    %v186 = vmul.f32 %v185, %v164
    %s187 = sld [smem:[#allocation6 + $0x81]]
    %v188 = vstv %s187
    %v189 = vmul.f32 %v188, %v165
    %v190 = vadd.f32 %v186, %v189
    %s191 = sld [smem:[#allocation6 + $0x82]]
    %v192 = vstv %s191
    %v193 = vmul.f32 %v192, %v166
    %v194 = vadd.f32 %v190, %v193
    %s195 = sld [smem:[#allocation6 + $0x83]]
    %v196 = vstv %s195
    %v197 = vadd.f32 %v194, %v196
    %v198 = vsub.f32 %v197, %v165
    %v199 = vmul.f32 %v198, %v198
    %v200 = vadd.f32 %v183, %v199
    %s201 = sld [smem:[#allocation6 + $0x100]]
    %v202 = vstv %s201
    %v203 = vmul.f32 %v202, %v164
    %s204 = sld [smem:[#allocation6 + $0x101]]
    %v205 = vstv %s204
    %v206 = vmul.f32 %v205, %v165
    %v207 = vadd.f32 %v203, %v206
    %s208 = sld [smem:[#allocation6 + $0x102]]
    %v209 = vstv %s208
    %v210 = vmul.f32 %v209, %v166
    %v211 = vadd.f32 %v207, %v210
    %s212 = sld [smem:[#allocation6 + $0x103]]
    %v213 = vstv %s212
    %v214 = vadd.f32 %v211, %v213
    %v215 = vsub.f32 %v214, %v166
    %v216 = vmul.f32 %v215, %v215
    %v217 = vadd.f32 %v200, %v216
    %vm218 = vcmp.lt.s32.totalorder %v149, 256
    %v219 = vrsqrt.pop %v217
    %v220 = vmul.f32 %v217, %v219
    %vm221 = vcmp.eq.f32.partialorder %v217, inf
    %v222 = vsel %vm221, %v217, %v220
    %vm223 = vcmp.eq.f32.partialorder %v217, 0.0
    %v224 = vand.u32 %v217, 2147483648
    %v225 = vsel %vm223, %v224, %v222
    %v226 = vsel %vm218, %v225, 0.0
    %227 = vadd.xlane.f32.xlu0 %v226
    %v228 = vpop.xlane.xlu0 %227
    %v229 = vrot.slane %v228, 4
    %v230 = vadd.f32 %v228, %v229
    %v231 = vrot.slane %v230, 2
    %v232 = vadd.f32 %v230, %v231
    %v233 = vrot.slane %v232, 1
    %v234 = vadd.f32 %v232, %v233
    %v235 = vmul.f32 %v234, 0.00390625
    %236 = vst.msk [vmem:[#allocation13] sm:$0x1] %vm162, %v235
    // Predicated region
    $region42: #{_evaluator_forward.1} parent=1 // pred_check
      _
    $region43: #{_evaluator_forward.1} parent=1 // pred_check_branch
      %238 = sbr.rel (0) target = $region45
    $region44: #{_evaluator_forward.1} parent=1 // pred_region
      %s240 = ssub.s32 16, 16
      %241 = vsyncadd [#allocation4], %s240
      %s243 = sshll.u32 [#allocation12], 4
      %s244 = int_to_ptr.vmem [resolvable:$true] %s243
      %246 = dma.vmem_to_hbm [thread:$0]  %s244, 16, %s5, [#allocation4]
    $region45: #{_evaluator_forward.1} parent=1 // pred_fallthru
      _
    // Predicated region
    $region46: #{_evaluator_forward.1} parent=1 // pred_check
      _
    $region47: #{_evaluator_forward.1} parent=1 // pred_check_branch
      %248 = sbr.rel (0) target = $region49
    $region48: #{_evaluator_forward.1} parent=1 // pred_region
      %s250 = ssub.s32 16, 16
      %251 = vsyncadd [#allocation14], %s250
      %s253 = sshll.u32 [#allocation13], 4
      %s254 = int_to_ptr.vmem [resolvable:$true] %s253
      %256 = dma.vmem_to_hbm [thread:$0]  %s254, 16, %s6, [#allocation14]
    $region49: #{_evaluator_forward.1} parent=1 // pred_fallthru
      _
    // Predicated region
    $region50: #{_evaluator_forward.1} parent=1 // pred_check
      _
    $region51: #{_evaluator_forward.1} parent=1 // pred_check_branch
      %258 = sbr.rel (0) target = $region53
    $region52: #{_evaluator_forward.1} parent=1 // pred_region
      %259 = dma.done [#allocation4], 16
    $region53: #{_evaluator_forward.1} parent=1 // pred_fallthru
      _
    // Predicated region
    $region54: #{_evaluator_forward.1} parent=1 // pred_check
      _
    $region55: #{_evaluator_forward.1} parent=1 // pred_check_branch
      %261 = sbr.rel (0) target = $region57
    $region56: #{_evaluator_forward.1} parent=1 // pred_region
      %262 = dma.done [#allocation14], 16
    $region57: #{_evaluator_forward.1} parent=1 // pred_fallthru
      _
    %263 = vsyncpa [#allocation3], 1
    %264 = vsyncpa [#allocation10], 1
    %265 = vsyncpa [#allocation4], 1
    %266 = vsyncpa [#allocation14], 1
    %267 = vsyncpa [#allocation5], 1
    %268 = vsyncpa [#allocation7], 1

</llo_original>
